<compile_context>
chip_gen: v7x
topology: tpu7x:2x2x1
jax: 0.10.0
libtpu: 0.0.40
codegen_flags: <defaults>
</compile_context>

<pallas_src>
import functools

import numpy as np

import jax
import jax.numpy as jnp
from jax.experimental import pallas as pl
from jax.experimental.pallas import tpu as pltpu

KERNEL_SIZE = 3  # module default; kernel below is specialized for 3x3 (padding=1)
K2 = KERNEL_SIZE * KERNEL_SIZE


def _cdiv(a: int, b: int) -> int:
    return -(-a // b)


def _round_up(a: int, b: int) -> int:
    return _cdiv(a, b) * b


def _unfold_kernel(mask_ref, x_ref, o_ref, *, hw_pad: int, deltas, needs_mask):
    # mask_ref: (K2, hw_pad) int32   0/1 border masks (pad lanes are 0)
    # x_ref:    (n_blk, hw_pad)      flattened, lane-padded image planes
    # o_ref:    (n_blk, K2*hw_pad)   columns [k*hw_pad, (k+1)*hw_pad) hold tap k
    x = x_ref[...]
    zero = jnp.zeros((), x.dtype)
    for k in range(K2):
        delta = deltas[k]
        if delta == 0:
            shifted = x
        else:
            # out[p] = x[(p + delta) mod hw_pad]; for every mask-valid position the
            # source index is in-image (no wrap), and wrapped lanes are masked to 0.
            shifted = pltpu.roll(x, shift=(-delta) % hw_pad, axis=1)
        if needs_mask[k]:
            mk = mask_ref[k:k + 1, :] != 0            # (1, hw_pad), sublane-broadcast
            val = jnp.where(mk, shifted, zero)
        else:
            val = shifted
        # Dense, 128-aligned store; every output element written exactly once.
        o_ref[:, k * hw_pad:(k + 1) * hw_pad] = val


def _build_masks(H: int, W: int, hw_pad: int) -> np.ndarray:
    """Trace-time (K2, hw_pad) int32 validity masks for the 9 zero-padded shifts."""
    hh = np.repeat(np.arange(H), W)
    ww = np.tile(np.arange(W), H)
    masks = np.zeros((K2, hw_pad), dtype=np.int32)
    for k in range(K2):
        dh, dw = divmod(k, KERNEL_SIZE)
        valid = np.ones(H * W, dtype=bool)
        if dh == 0:
            valid &= hh >= 1
        elif dh == 2:
            valid &= hh <= H - 2
        if dw == 0:
            valid &= ww >= 1
        elif dw == 2:
            valid &= ww <= W - 2
        masks[k, :H * W] = valid.astype(np.int32)
    return masks


def _pick_block_rows(total_rows: int, hw_pad: int, itemsize: int,
                     vmem_limit: int, sublane: int) -> int:
    """How many (b, c) planes to process per grid step."""
    # Double-buffered I/O working set per row (input + 9-tap output, 2 buffers each).
    per_row = 2 * (1 + K2) * hw_pad * itemsize
    budget = int(vmem_limit * 0.70)            # ~30% headroom: temps + Mosaic scratch
    n = max(1, budget // per_row)
    # DMA efficiency plateaus at a few MB per buffer; cap per-step output ~4 MiB.
    n = min(n, max(1, (4 * 1024 * 1024) // (K2 * hw_pad * itemsize)))
    # Prefer >= 8 grid steps (>= 4 per TensorCore on v7x) for prefetch/writeback overlap.
    n = min(n, max(1, _cdiv(total_rows, 8)))
    if n >= total_rows:
        return total_rows
    n = max(sublane, (n // sublane) * sublane)  # dtype sublane packing (8/16/32)
    if n >= total_rows:
        return total_rows
    # Nudge toward an even step count (2-TC v7x load balance) if a nearby
    # sublane multiple achieves it.
    if _cdiv(total_rows, n) % 2 == 1:
        for cand in (n - sublane, n - 2 * sublane):
            if cand >= sublane and _cdiv(total_rows, cand) % 2 == 0:
                n = cand
                break
    return n


def unfold_pallas(x, kernel_size: int = 3):
    assert kernel_size == 3, "kernel specialized for the module default kernel_size=3"
    B, C, H, W = x.shape
    HW = H * W
    BC = B * C
    hw_pad = _round_up(HW, 128)                # lane-dense per-tap slabs
    itemsize = jnp.dtype(x.dtype).itemsize
    sublane = max(8, 32 // max(1, itemsize))   # 8 f32 / 16 bf16 / 32 int8

    try:
        vmem_cap = pltpu.get_tpu_info().vmem_capacity_bytes
    except Exception:
        vmem_cap = 64 * 1024 * 1024            # conservative (v7x per-core) fallback
    # ~45 MiB on v7x (64 MiB part), 64 MiB on v5e/v6e (128 MiB parts).
    vmem_limit = min(int(vmem_cap * 0.70), 64 * 1024 * 1024)

    n_blk = _pick_block_rows(BC, hw_pad, itemsize, vmem_limit, sublane)
    grid = (_cdiv(BC, n_blk),)

    x_flat = x.reshape(BC, HW)                 # contiguous reshape: free
    if hw_pad != HW:
        x_flat = jnp.pad(x_flat, ((0, 0), (0, hw_pad - HW)))

    masks_np = _build_masks(H, W, hw_pad)
    needs_mask = tuple(bool((masks_np[k] == 0).any()) for k in range(K2))
    deltas = tuple((k // KERNEL_SIZE - 1) * W + (k % KERNEL_SIZE - 1) for k in range(K2))
    masks = jnp.asarray(masks_np)

    out = pl.pallas_call(
        functools.partial(_unfold_kernel, hw_pad=hw_pad, deltas=deltas,
                          needs_mask=needs_mask),
        out_shape=jax.ShapeDtypeStruct((BC, K2 * hw_pad), x.dtype),
        grid_spec=pltpu.PrefetchScalarGridSpec(
            num_scalar_prefetch=0,
            grid=grid,
            in_specs=[
                # Tiny constant mask table; same block every step -> loaded once.
                pl.BlockSpec((K2, hw_pad), lambda i: (0, 0)),
                pl.BlockSpec((n_blk, hw_pad), lambda i: (i, 0)),
            ],
            out_specs=pl.BlockSpec((n_blk, K2 * hw_pad), lambda i: (i, 0)),
        ),
        compiler_params=pltpu.CompilerParams(
            dimension_semantics=("parallel",),
            vmem_limit_bytes=vmem_limit,
        ),
        cost_estimate=pl.CostEstimate(
            flops=0,
            transcendentals=0,
            bytes_accessed=(1 + K2) * BC * hw_pad * itemsize,  # 1x read + 9x write
        ),
    )(masks, x_flat)

    # (BC, 9*hw_pad) and (B, C*9, HW) share the same flat (b, c, k, hw) ordering,
    # matching torch's (B*C, 9, H, W).reshape(B, C*9, H*W).
    if hw_pad == HW:
        return out.reshape(B, C * K2, HW)
    # TODO(synk): have the downstream affinity matmul consume the lane-padded
    # layout directly; this strip costs one extra XLA copy for non-aligned HW.
    return out.reshape(B, C, K2, hw_pad)[..., :HW].reshape(B, C * K2, HW)


def unfold_reference(x, kernel_size: int = 3):
    """Pure-JAX reference replicating F.conv2d with eye(9) identity kernels."""
    B, C, H, W = x.shape
    p = kernel_size // 2
    xp = jnp.pad(x, ((0, 0), (0, 0), (p, p), (p, p)))
    outs = []
    for dh in range(kernel_size):
        for dw in range(kernel_size):
            outs.append(xp[:, :, dh:dh + H, dw:dw + W])
    out = jnp.stack(outs, axis=2)  # (B, C, 9, H, W)
    return out.reshape(B, C * kernel_size * kernel_size, H * W)


if __name__ == "__main__":
    key = jax.random.PRNGKey(0)

    # Primary check: module-consistent small shape (H*W is 128-aligned).
    B, C, H, W = 2, 4, 16, 16
    x = jax.random.normal(key, (B, C, H, W), dtype=jnp.float32)
    y = jax.block_until_ready(unfold_pallas(x))
    y_ref = unfold_reference(x)
    assert y.shape == (B, C * 9, H * W), y.shape
    assert jnp.array_equal(y, y_ref), "mismatch vs reference (aligned HW)"

    # Secondary check: realistic non-128-multiple spatial size (lane-padded path).
    B2, C2, H2, W2 = 2, 3, 14, 14
    x2 = jax.random.normal(jax.random.PRNGKey(1), (B2, C2, H2, W2), dtype=jnp.float32)
    y2 = jax.block_until_ready(unfold_pallas(x2))
    y2_ref = unfold_reference(x2)
    assert y2.shape == (B2, C2 * 9, H2 * W2), y2.shape
    assert jnp.array_equal(y2, y2_ref), "mismatch vs reference (padded HW)"

    print("KERNEL_OK")
</pallas_src>

<mosaic_0001>
module attributes {stable_mosaic.version = 11 : i64} {
  func.func @_unfold_kernel(%arg0: i32, %arg1: memref<9x256xi32, #tpu.memory_space<vmem>>, %arg2: memref<8x256xf32, #tpu.memory_space<vmem>>, %arg3: memref<8x2304xf32, #tpu.memory_space<vmem>>) attributes {dimension_semantics = [#tpu.dimension_semantics<parallel>], iteration_bounds = array<i64: 1>, scalar_prefetch = 0 : i64, scratch_operands = 0 : i64, tpu.core_type = #tpu.core_type<tc>, window_params = [{pipeline_mode = #tpu.pipeline_mode<synchronous>, transform_indices = @transform_0, window_bounds = array<i64: 9, 256>}, {transform_indices = @transform_1, window_bounds = array<i64: 8, 256>}, {transform_indices = @transform_2, window_bounds = array<i64: 8, 2304>}]} {
    %c0 = arith.constant 0 : index
    %c0_0 = arith.constant 0 : index
    %0 = vector.load %arg2[%c0, %c0_0] : memref<8x256xf32, #tpu.memory_space<vmem>>, vector<8x256xf32>
    %c17_i32 = arith.constant 17 : i32
    %1 = tpu.dynamic_rotate %0 by %c17_i32 dim 1 : vector<8x256xf32>, i32 -> vector<8x256xf32>
    %c0_1 = arith.constant 0 : index
    %c0_2 = arith.constant 0 : index
    %2 = vector.load %arg1[%c0_1, %c0_2] : memref<9x256xi32, #tpu.memory_space<vmem>>, vector<1x256xi32>
    %c0_i32 = arith.constant 0 : i32
    %3 = vector.broadcast %c0_i32 : i32 to vector<1x256xi32>
    %4 = arith.cmpi ne, %2, %3 : vector<1x256xi32>
    %cst = arith.constant 0.000000e+00 : f32
    %5 = vector.shape_cast %4 : vector<1x256xi1> to vector<1x256xi1>
    %6 = vector.broadcast %5 : vector<1x256xi1> to vector<8x256xi1>
    %7 = vector.broadcast %cst : f32 to vector<8x256xf32>
    %8 = arith.select %6, %1, %7 : vector<8x256xi1>, vector<8x256xf32>
    %c0_3 = arith.constant 0 : index
    %c0_4 = arith.constant 0 : index
    %9 = vector.load %arg3[%c0_3, %c0_4] : memref<8x2304xf32, #tpu.memory_space<vmem>>, vector<8x256xf32>
    tpu.vector_store %arg3[%c0_3, %c0_4], %8 {strides = array<i32>} : memref<8x2304xf32, #tpu.memory_space<vmem>>, vector<8x256xf32>,
    %c16_i32 = arith.constant 16 : i32
    %10 = tpu.dynamic_rotate %0 by %c16_i32 dim 1 : vector<8x256xf32>, i32 -> vector<8x256xf32>
    %c1 = arith.constant 1 : index
    %c0_5 = arith.constant 0 : index
    %11 = vector.load %arg1[%c1, %c0_5] : memref<9x256xi32, #tpu.memory_space<vmem>>, vector<1x256xi32>
    %c0_i32_6 = arith.constant 0 : i32
    %12 = vector.broadcast %c0_i32_6 : i32 to vector<1x256xi32>
    %13 = arith.cmpi ne, %11, %12 : vector<1x256xi32>
    %cst_7 = arith.constant 0.000000e+00 : f32
    %14 = vector.shape_cast %13 : vector<1x256xi1> to vector<1x256xi1>
    %15 = vector.broadcast %14 : vector<1x256xi1> to vector<8x256xi1>
    %16 = vector.broadcast %cst_7 : f32 to vector<8x256xf32>
    %17 = arith.select %15, %10, %16 : vector<8x256xi1>, vector<8x256xf32>
    %c0_8 = arith.constant 0 : index
    %c256 = arith.constant 256 : index
    %18 = vector.load %arg3[%c0_8, %c256] : memref<8x2304xf32, #tpu.memory_space<vmem>>, vector<8x256xf32>
    tpu.vector_store %arg3[%c0_8, %c256], %17 {strides = array<i32>} : memref<8x2304xf32, #tpu.memory_space<vmem>>, vector<8x256xf32>,
    %c15_i32 = arith.constant 15 : i32
    %19 = tpu.dynamic_rotate %0 by %c15_i32 dim 1 : vector<8x256xf32>, i32 -> vector<8x256xf32>
    %c2 = arith.constant 2 : index
    %c0_9 = arith.constant 0 : index
    %20 = vector.load %arg1[%c2, %c0_9] : memref<9x256xi32, #tpu.memory_space<vmem>>, vector<1x256xi32>
    %c0_i32_10 = arith.constant 0 : i32
    %21 = vector.broadcast %c0_i32_10 : i32 to vector<1x256xi32>
    %22 = arith.cmpi ne, %20, %21 : vector<1x256xi32>
    %cst_11 = arith.constant 0.000000e+00 : f32
    %23 = vector.shape_cast %22 : vector<1x256xi1> to vector<1x256xi1>
    %24 = vector.broadcast %23 : vector<1x256xi1> to vector<8x256xi1>
    %25 = vector.broadcast %cst_11 : f32 to vector<8x256xf32>
    %26 = arith.select %24, %19, %25 : vector<8x256xi1>, vector<8x256xf32>
    %c0_12 = arith.constant 0 : index
    %c512 = arith.constant 512 : index
    %27 = vector.load %arg3[%c0_12, %c512] : memref<8x2304xf32, #tpu.memory_space<vmem>>, vector<8x256xf32>
    tpu.vector_store %arg3[%c0_12, %c512], %26 {strides = array<i32>} : memref<8x2304xf32, #tpu.memory_space<vmem>>, vector<8x256xf32>,
    %c1_i32 = arith.constant 1 : i32
    %28 = tpu.dynamic_rotate %0 by %c1_i32 dim 1 : vector<8x256xf32>, i32 -> vector<8x256xf32>
    %c3 = arith.constant 3 : index
    %c0_13 = arith.constant 0 : index
    %29 = vector.load %arg1[%c3, %c0_13] : memref<9x256xi32, #tpu.memory_space<vmem>>, vector<1x256xi32>
    %c0_i32_14 = arith.constant 0 : i32
    %30 = vector.broadcast %c0_i32_14 : i32 to vector<1x256xi32>
    %31 = arith.cmpi ne, %29, %30 : vector<1x256xi32>
    %cst_15 = arith.constant 0.000000e+00 : f32
    %32 = vector.shape_cast %31 : vector<1x256xi1> to vector<1x256xi1>
    %33 = vector.broadcast %32 : vector<1x256xi1> to vector<8x256xi1>
    %34 = vector.broadcast %cst_15 : f32 to vector<8x256xf32>
    %35 = arith.select %33, %28, %34 : vector<8x256xi1>, vector<8x256xf32>
    %c0_16 = arith.constant 0 : index
    %c768 = arith.constant 768 : index
    %36 = vector.load %arg3[%c0_16, %c768] : memref<8x2304xf32, #tpu.memory_space<vmem>>, vector<8x256xf32>
    tpu.vector_store %arg3[%c0_16, %c768], %35 {strides = array<i32>} : memref<8x2304xf32, #tpu.memory_space<vmem>>, vector<8x256xf32>,
    %c0_17 = arith.constant 0 : index
    %c1024 = arith.constant 1024 : index
    %37 = vector.load %arg3[%c0_17, %c1024] : memref<8x2304xf32, #tpu.memory_space<vmem>>, vector<8x256xf32>
    tpu.vector_store %arg3[%c0_17, %c1024], %0 {strides = array<i32>} : memref<8x2304xf32, #tpu.memory_space<vmem>>, vector<8x256xf32>,
    %c255_i32 = arith.constant 255 : i32
    %38 = tpu.dynamic_rotate %0 by %c255_i32 dim 1 : vector<8x256xf32>, i32 -> vector<8x256xf32>
    %c5 = arith.constant 5 : index
    %c0_18 = arith.constant 0 : index
    %39 = vector.load %arg1[%c5, %c0_18] : memref<9x256xi32, #tpu.memory_space<vmem>>, vector<1x256xi32>
    %c0_i32_19 = arith.constant 0 : i32
    %40 = vector.broadcast %c0_i32_19 : i32 to vector<1x256xi32>
    %41 = arith.cmpi ne, %39, %40 : vector<1x256xi32>
    %cst_20 = arith.constant 0.000000e+00 : f32
    %42 = vector.shape_cast %41 : vector<1x256xi1> to vector<1x256xi1>
    %43 = vector.broadcast %42 : vector<1x256xi1> to vector<8x256xi1>
    %44 = vector.broadcast %cst_20 : f32 to vector<8x256xf32>
    %45 = arith.select %43, %38, %44 : vector<8x256xi1>, vector<8x256xf32>
    %c0_21 = arith.constant 0 : index
    %c1280 = arith.constant 1280 : index
    %46 = vector.load %arg3[%c0_21, %c1280] : memref<8x2304xf32, #tpu.memory_space<vmem>>, vector<8x256xf32>
    tpu.vector_store %arg3[%c0_21, %c1280], %45 {strides = array<i32>} : memref<8x2304xf32, #tpu.memory_space<vmem>>, vector<8x256xf32>,
    %c241_i32 = arith.constant 241 : i32
    %47 = tpu.dynamic_rotate %0 by %c241_i32 dim 1 : vector<8x256xf32>, i32 -> vector<8x256xf32>
    %c6 = arith.constant 6 : index
    %c0_22 = arith.constant 0 : index
    %48 = vector.load %arg1[%c6, %c0_22] : memref<9x256xi32, #tpu.memory_space<vmem>>, vector<1x256xi32>
    %c0_i32_23 = arith.constant 0 : i32
    %49 = vector.broadcast %c0_i32_23 : i32 to vector<1x256xi32>
    %50 = arith.cmpi ne, %48, %49 : vector<1x256xi32>
    %cst_24 = arith.constant 0.000000e+00 : f32
    %51 = vector.shape_cast %50 : vector<1x256xi1> to vector<1x256xi1>
    %52 = vector.broadcast %51 : vector<1x256xi1> to vector<8x256xi1>
    %53 = vector.broadcast %cst_24 : f32 to vector<8x256xf32>
    %54 = arith.select %52, %47, %53 : vector<8x256xi1>, vector<8x256xf32>
    %c0_25 = arith.constant 0 : index
    %c1536 = arith.constant 1536 : index
    %55 = vector.load %arg3[%c0_25, %c1536] : memref<8x2304xf32, #tpu.memory_space<vmem>>, vector<8x256xf32>
    tpu.vector_store %arg3[%c0_25, %c1536], %54 {strides = array<i32>} : memref<8x2304xf32, #tpu.memory_space<vmem>>, vector<8x256xf32>,
    %c240_i32 = arith.constant 240 : i32
    %56 = tpu.dynamic_rotate %0 by %c240_i32 dim 1 : vector<8x256xf32>, i32 -> vector<8x256xf32>
    %c7 = arith.constant 7 : index
    %c0_26 = arith.constant 0 : index
    %57 = vector.load %arg1[%c7, %c0_26] : memref<9x256xi32, #tpu.memory_space<vmem>>, vector<1x256xi32>
    %c0_i32_27 = arith.constant 0 : i32
    %58 = vector.broadcast %c0_i32_27 : i32 to vector<1x256xi32>
    %59 = arith.cmpi ne, %57, %58 : vector<1x256xi32>
    %cst_28 = arith.constant 0.000000e+00 : f32
    %60 = vector.shape_cast %59 : vector<1x256xi1> to vector<1x256xi1>
    %61 = vector.broadcast %60 : vector<1x256xi1> to vector<8x256xi1>
    %62 = vector.broadcast %cst_28 : f32 to vector<8x256xf32>
    %63 = arith.select %61, %56, %62 : vector<8x256xi1>, vector<8x256xf32>
    %c0_29 = arith.constant 0 : index
    %c1792 = arith.constant 1792 : index
    %64 = vector.load %arg3[%c0_29, %c1792] : memref<8x2304xf32, #tpu.memory_space<vmem>>, vector<8x256xf32>
    tpu.vector_store %arg3[%c0_29, %c1792], %63 {strides = array<i32>} : memref<8x2304xf32, #tpu.memory_space<vmem>>, vector<8x256xf32>,
    %c239_i32 = arith.constant 239 : i32
    %65 = tpu.dynamic_rotate %0 by %c239_i32 dim 1 : vector<8x256xf32>, i32 -> vector<8x256xf32>
    %c8 = arith.constant 8 : index
    %c0_30 = arith.constant 0 : index
    %66 = vector.load %arg1[%c8, %c0_30] : memref<9x256xi32, #tpu.memory_space<vmem>>, vector<1x256xi32>
    %c0_i32_31 = arith.constant 0 : i32
    %67 = vector.broadcast %c0_i32_31 : i32 to vector<1x256xi32>
    %68 = arith.cmpi ne, %66, %67 : vector<1x256xi32>
    %cst_32 = arith.constant 0.000000e+00 : f32
    %69 = vector.shape_cast %68 : vector<1x256xi1> to vector<1x256xi1>
    %70 = vector.broadcast %69 : vector<1x256xi1> to vector<8x256xi1>
    %71 = vector.broadcast %cst_32 : f32 to vector<8x256xf32>
    %72 = arith.select %70, %65, %71 : vector<8x256xi1>, vector<8x256xf32>
    %c0_33 = arith.constant 0 : index
    %c2048 = arith.constant 2048 : index
    %73 = vector.load %arg3[%c0_33, %c2048] : memref<8x2304xf32, #tpu.memory_space<vmem>>, vector<8x256xf32>
    tpu.vector_store %arg3[%c0_33, %c2048], %72 {strides = array<i32>} : memref<8x2304xf32, #tpu.memory_space<vmem>>, vector<8x256xf32>,
    return
  }
  func.func @transform_0(%arg0: i32) -> (i32, i32) {
    %c0_i32 = arith.constant 0 : i32
    %c0_i32_0 = arith.constant 0 : i32
    %c0_i32_1 = arith.constant 0 : i32
    return %c0_i32, %c0_i32_0 : i32, i32
  }
  func.func @transform_1(%arg0: i32) -> (i32, i32) {
    %c0_i32 = arith.constant 0 : i32
    %c0_i32_0 = arith.constant 0 : i32
    return %arg0, %c0_i32 : i32, i32
  }
  func.func @transform_2(%arg0: i32) -> (i32, i32) {
    %c0_i32 = arith.constant 0 : i32
    %c0_i32_0 = arith.constant 0 : i32
    return %arg0, %c0_i32 : i32, i32
  }
}

</mosaic_0001>

<llo_original>
// kernel: tpu_custom_call.1
$region0: #{tpu_custom_call.1}
  #allocation0 [shape = 'u32[]', space=smem, size = 0x4, offset = 0x4, fixed_abs, tag = 'smem constant byte address 0x4 - core index']
  #allocation1 [shape = 'u32[144,128]{1,0:T(1,128)}', space=vmem, size = 0x12000, scoped, tag = 'internal scratch']
  %s0 = inlined_call_operand.hbm [shape: s32[9,256], index: 0, kind: input, shape index: {}]
  %s1 = inlined_call_operand.hbm [shape: f32[8,256], index: 1, kind: input, shape index: {}]
  %s2 = inlined_call_operand.hbm [shape: f32[8,2304], index: 2, kind: output, shape index: {}]
  %s3 = sld [smem:[#allocation0]]
  $region26: #{tpu_custom_call.1} parent=0
    _
  %s5 = ssub.s32 1, %s3
  %s6 = scalar_select 0, %s5, %s3
  $region1: #{tpu_custom_call.1} parent=0
    #allocation2 [shape = 'u8[16384]{0}', space=vmem, size = 0x4000, scoped, tag = 'input window, operand 0, single buffered']
    #allocation3 [shape = 's32[1]{0}', space=sflag, size = 0x4, scoped, tag = 'scoped memory for tpu_custom_call.1']
    #allocation4 [shape = 's32[1]{0}', space=sflag, size = 0x4, scoped, tag = 'scoped memory for tpu_custom_call.1']
    #allocation5 [shape = 'u8[8192]{0}', space=vmem, size = 0x2000, scoped, tag = 'input window, operand 1, single buffered']
    #allocation6 [shape = 's32[1]{0}', space=sflag, size = 0x4, scoped, tag = 'scoped memory for tpu_custom_call.1']
    #allocation7 [shape = 'u8[73728]{0}', space=vmem, size = 0x12000, scoped, tag = 'output window, operand 0, single buffered']
    %7 = vsyncpa [#allocation3], 0
    %8 = vsyncpa [#allocation6], 0
    %9 = vsyncpa [#allocation4], 0
    // Predicated region
    $region2: #{tpu_custom_call.1} parent=1 // pred_check
      _
    $region3: #{tpu_custom_call.1} parent=1 // pred_check_branch
      %11 = sbr.rel (0) target = $region5
    $region4: #{tpu_custom_call.1} parent=1 // pred_region
      %s13 = ssub.s32 512, 512
      %14 = vsyncadd [#allocation3], %s13
      %s15 = sshll.u32 [#allocation2], 4
      %s16 = int_to_ptr.vmem [resolvable:$true] %s15
      %21 = dma.hbm_to_vmem [thread:$0]  %s0, 512, %s16, [#allocation3], 256, 256, 16
    $region5: #{tpu_custom_call.1} parent=1 // pred_fallthru
      _
    // Predicated region
    $region6: #{tpu_custom_call.1} parent=1 // pred_check
      _
    $region7: #{tpu_custom_call.1} parent=1 // pred_check_branch
      %23 = sbr.rel (0) target = $region9
    $region8: #{tpu_custom_call.1} parent=1 // pred_region
      %s25 = ssub.s32 256, 256
      %26 = vsyncadd [#allocation6], %s25
      %s28 = sshll.u32 [#allocation5], 4
      %s29 = int_to_ptr.vmem [resolvable:$true] %s28
      %31 = dma.hbm_to_vmem [thread:$0]  %s1, 256, %s29, [#allocation6]
    $region9: #{tpu_custom_call.1} parent=1 // pred_fallthru
      _
    // Predicated region
    $region10: #{tpu_custom_call.1} parent=1 // pred_check
      _
    $region11: #{tpu_custom_call.1} parent=1 // pred_check_branch
      %33 = sbr.rel (0) target = $region13
    $region12: #{tpu_custom_call.1} parent=1 // pred_region
      %34 = dma.done [#allocation3], 512
    $region13: #{tpu_custom_call.1} parent=1 // pred_fallthru
      _
    // Predicated region
    $region14: #{tpu_custom_call.1} parent=1 // pred_check
      _
    $region15: #{tpu_custom_call.1} parent=1 // pred_check_branch
      %36 = sbr.rel (0) target = $region17
    $region16: #{tpu_custom_call.1} parent=1 // pred_region
      %37 = dma.done [#allocation6], 256
    $region17: #{tpu_custom_call.1} parent=1 // pred_fallthru
      _
    %v38 = vld [vmem:[#allocation5] sm:$0xff]
    %v39 = vld [vmem:[#allocation5 + $0x8] sm:$0xff]
    %40 = vrot.lane.b32.xlu0 %v38, 17
    %v41 = vpop.permute.xlu0 %40
    %42 = vrot.lane.b32.xlu0 %v39, 17
    %v43 = vpop.permute.xlu0 %42
    %v44 = vlaneseq
    %v45 = vand.u32 %v44, 127
    %vm46 = vcmp.lt.s32.totalorder %v45, 17
    %v47 = vsel %vm46, %v41, %v43
    %v48 = vsel %vm46, %v43, %v41
    %v49 = vld [vmem:[#allocation2] ss:$8 sm:$0x3]
    %vm50 = vcmp.ne.s32.totalorder %v49, 0
    %v51 = vsel %vm50, 1, 0
    %v52 = vlaneseq
    %v53 = vshrl.u32 %v52, 7
    %v54 = vsub.s32 0, %v53
    %v55 = vrot.slane %v51, %v54
    %v56 = vlaneseq
    %v57 = vshrl.u32 %v56, 7
    %v58 = vsub.s32 1, %v57
    %v59 = vrot.slane %v51, %v58
    %vm60 = vcmp.eq.s32.totalorder %v55, 1
    %vm61 = vcmp.eq.s32.totalorder %v59, 1
    %v62 = vsel %vm60, %v48, 0.0
    %v63 = vsel %vm61, %v47, 0.0
    %64 = vst [vmem:[#allocation7] sm:$0xff] %v62
    %65 = vst [vmem:[#allocation7 + $0x8] sm:$0xff] %v63
    %66 = vrot.lane.b32.xlu0 %v38, 16
    %v67 = vpop.permute.xlu0 %66
    %68 = vrot.lane.b32.xlu0 %v39, 16
    %v69 = vpop.permute.xlu0 %68
    %vm70 = vcmp.lt.s32.totalorder %v45, 16
    %v71 = vsel %vm70, %v67, %v69
    %v72 = vsel %vm70, %v69, %v67
    %s73 = scalar_lea.vmem [#allocation2], 1
    %v74 = vld [vmem:[%s73] ss:$8 sm:$0x3]
    %vm75 = vcmp.ne.s32.totalorder %v74, 0
    %v76 = vsel %vm75, 1, 0
    %v77 = vlaneseq
    %v78 = vshrl.u32 %v77, 7
    %v79 = vsub.s32 0, %v78
    %v80 = vrot.slane %v76, %v79
    %v81 = vlaneseq
    %v82 = vshrl.u32 %v81, 7
    %v83 = vsub.s32 1, %v82
    %v84 = vrot.slane %v76, %v83
    %vm85 = vcmp.eq.s32.totalorder %v80, 1
    %vm86 = vcmp.eq.s32.totalorder %v84, 1
    %v87 = vsel %vm85, %v72, 0.0
    %v88 = vsel %vm86, %v71, 0.0
    %89 = vst [vmem:[#allocation7 + $0x10] sm:$0xff] %v87
    %90 = vst [vmem:[#allocation7 + $0x18] sm:$0xff] %v88
    %91 = vrot.lane.b32.xlu0 %v38, 15
    %v92 = vpop.permute.xlu0 %91
    %93 = vrot.lane.b32.xlu0 %v39, 15
    %v94 = vpop.permute.xlu0 %93
    %vm95 = vcmp.lt.s32.totalorder %v45, 15
    %v96 = vsel %vm95, %v92, %v94
    %v97 = vsel %vm95, %v94, %v92
    %s98 = scalar_lea.vmem [#allocation2], 2
    %v99 = vld [vmem:[%s98] ss:$8 sm:$0x3]
    %vm100 = vcmp.ne.s32.totalorder %v99, 0
    %v101 = vsel %vm100, 1, 0
    %v102 = vlaneseq
    %v103 = vshrl.u32 %v102, 7
    %v104 = vsub.s32 0, %v103
    %v105 = vrot.slane %v101, %v104
    %v106 = vlaneseq
    %v107 = vshrl.u32 %v106, 7
    %v108 = vsub.s32 1, %v107
    %v109 = vrot.slane %v101, %v108
    %vm110 = vcmp.eq.s32.totalorder %v105, 1
    %vm111 = vcmp.eq.s32.totalorder %v109, 1
    %v112 = vsel %vm110, %v97, 0.0
    %v113 = vsel %vm111, %v96, 0.0
    %114 = vst [vmem:[#allocation7 + $0x20] sm:$0xff] %v112
    %115 = vst [vmem:[#allocation7 + $0x28] sm:$0xff] %v113
    %116 = vrot.lane.b32.xlu0 %v38, 1
    %v117 = vpop.permute.xlu0 %116
    %118 = vrot.lane.b32.xlu0 %v39, 1
    %v119 = vpop.permute.xlu0 %118
    %vm120 = vcmp.lt.s32.totalorder %v45, 1
    %v121 = vsel %vm120, %v117, %v119
    %v122 = vsel %vm120, %v119, %v117
    %s123 = scalar_lea.vmem [#allocation2], 3
    %v124 = vld [vmem:[%s123] ss:$8 sm:$0x3]
    %vm125 = vcmp.ne.s32.totalorder %v124, 0
    %v126 = vsel %vm125, 1, 0
    %v127 = vlaneseq
    %v128 = vshrl.u32 %v127, 7
    %v129 = vsub.s32 0, %v128
    %v130 = vrot.slane %v126, %v129
    %v131 = vlaneseq
    %v132 = vshrl.u32 %v131, 7
    %v133 = vsub.s32 1, %v132
    %v134 = vrot.slane %v126, %v133
    %vm135 = vcmp.eq.s32.totalorder %v130, 1
    %vm136 = vcmp.eq.s32.totalorder %v134, 1
    %v137 = vsel %vm135, %v122, 0.0
    %v138 = vsel %vm136, %v121, 0.0
    %139 = vst [vmem:[#allocation7 + $0x30] sm:$0xff] %v137
    %140 = vst [vmem:[#allocation7 + $0x38] sm:$0xff] %v138
    %141 = vst [vmem:[#allocation7 + $0x40] sm:$0xff] %v38
    %142 = vst [vmem:[#allocation7 + $0x48] sm:$0xff] %v39
    %143 = vrot.lane.b32.xlu0 %v38, 127
    %v144 = vpop.permute.xlu0 %143
    %145 = vrot.lane.b32.xlu0 %v39, 127
    %v146 = vpop.permute.xlu0 %145
    %vm147 = vcmp.lt.s32.totalorder %v45, 127
    %v148 = vsel %vm147, %v144, %v146
    %v149 = vsel %vm147, %v146, %v144
    %s150 = scalar_lea.vmem [#allocation2], 5
    %v151 = vld [vmem:[%s150] ss:$8 sm:$0x3]
    %vm152 = vcmp.ne.s32.totalorder %v151, 0
    %v153 = vsel %vm152, 1, 0
    %v154 = vlaneseq
    %v155 = vshrl.u32 %v154, 7
    %v156 = vsub.s32 0, %v155
    %v157 = vrot.slane %v153, %v156
    %v158 = vlaneseq
    %v159 = vshrl.u32 %v158, 7
    %v160 = vsub.s32 1, %v159
    %v161 = vrot.slane %v153, %v160
    %vm162 = vcmp.eq.s32.totalorder %v157, 1
    %vm163 = vcmp.eq.s32.totalorder %v161, 1
    %v164 = vsel %vm162, %v148, 0.0
    %v165 = vsel %vm163, %v149, 0.0
    %166 = vst [vmem:[#allocation7 + $0x50] sm:$0xff] %v164
    %167 = vst [vmem:[#allocation7 + $0x58] sm:$0xff] %v165
    %168 = vrot.lane.b32.xlu0 %v38, 113
    %v169 = vpop.permute.xlu0 %168
    %170 = vrot.lane.b32.xlu0 %v39, 113
    %v171 = vpop.permute.xlu0 %170
    %vm172 = vcmp.lt.s32.totalorder %v45, 113
    %v173 = vsel %vm172, %v169, %v171
    %v174 = vsel %vm172, %v171, %v169
    %s175 = scalar_lea.vmem [#allocation2], 6
    %v176 = vld [vmem:[%s175] ss:$8 sm:$0x3]
    %vm177 = vcmp.ne.s32.totalorder %v176, 0
    %v178 = vsel %vm177, 1, 0
    %v179 = vlaneseq
    %v180 = vshrl.u32 %v179, 7
    %v181 = vsub.s32 0, %v180
    %v182 = vrot.slane %v178, %v181
    %v183 = vlaneseq
    %v184 = vshrl.u32 %v183, 7
    %v185 = vsub.s32 1, %v184
    %v186 = vrot.slane %v178, %v185
    %vm187 = vcmp.eq.s32.totalorder %v182, 1
    %vm188 = vcmp.eq.s32.totalorder %v186, 1
    %v189 = vsel %vm187, %v173, 0.0
    %v190 = vsel %vm188, %v174, 0.0
    %191 = vst [vmem:[#allocation7 + $0x60] sm:$0xff] %v189
    %192 = vst [vmem:[#allocation7 + $0x68] sm:$0xff] %v190
    %193 = vrot.lane.b32.xlu0 %v38, 112
    %v194 = vpop.permute.xlu0 %193
    %195 = vrot.lane.b32.xlu0 %v39, 112
    %v196 = vpop.permute.xlu0 %195
    %vm197 = vcmp.lt.s32.totalorder %v45, 112
    %v198 = vsel %vm197, %v194, %v196
    %v199 = vsel %vm197, %v196, %v194
    %s200 = scalar_lea.vmem [#allocation2], 7
    %v201 = vld [vmem:[%s200] ss:$8 sm:$0x3]
    %vm202 = vcmp.ne.s32.totalorder %v201, 0
    %v203 = vsel %vm202, 1, 0
    %v204 = vlaneseq
    %v205 = vshrl.u32 %v204, 7
    %v206 = vsub.s32 0, %v205
    %v207 = vrot.slane %v203, %v206
    %v208 = vlaneseq
    %v209 = vshrl.u32 %v208, 7
    %v210 = vsub.s32 1, %v209
    %v211 = vrot.slane %v203, %v210
    %vm212 = vcmp.eq.s32.totalorder %v207, 1
    %vm213 = vcmp.eq.s32.totalorder %v211, 1
    %v214 = vsel %vm212, %v198, 0.0
    %v215 = vsel %vm213, %v199, 0.0
    %216 = vst [vmem:[#allocation7 + $0x70] sm:$0xff] %v214
    %217 = vst [vmem:[#allocation7 + $0x78] sm:$0xff] %v215
    %218 = vrot.lane.b32.xlu0 %v38, 111
    %v219 = vpop.permute.xlu0 %218
    %220 = vrot.lane.b32.xlu0 %v39, 111
    %v221 = vpop.permute.xlu0 %220
    %vm222 = vcmp.lt.s32.totalorder %v45, 111
    %v223 = vsel %vm222, %v219, %v221
    %v224 = vsel %vm222, %v221, %v219
    %s225 = scalar_lea.vmem [#allocation2], 16
    %v226 = vld [vmem:[%s225] ss:$8 sm:$0x3]
    %vm227 = vcmp.ne.s32.totalorder %v226, 0
    %v228 = vsel %vm227, 1, 0
    %v229 = vlaneseq
    %v230 = vshrl.u32 %v229, 7
    %v231 = vsub.s32 0, %v230
    %v232 = vrot.slane %v228, %v231
    %v233 = vlaneseq
    %v234 = vshrl.u32 %v233, 7
    %v235 = vsub.s32 1, %v234
    %v236 = vrot.slane %v228, %v235
    %vm237 = vcmp.eq.s32.totalorder %v232, 1
    %vm238 = vcmp.eq.s32.totalorder %v236, 1
    %v239 = vsel %vm237, %v223, 0.0
    %v240 = vsel %vm238, %v224, 0.0
    %241 = vst [vmem:[#allocation7 + $0x80] sm:$0xff] %v239
    %242 = vst [vmem:[#allocation7 + $0x88] sm:$0xff] %v240
    // Predicated region
    $region18: #{tpu_custom_call.1} parent=1 // pred_check
      _
    $region19: #{tpu_custom_call.1} parent=1 // pred_check_branch
      %244 = sbr.rel (0) target = $region21
    $region20: #{tpu_custom_call.1} parent=1 // pred_region
      %s246 = ssub.s32 2304, 2304
      %247 = vsyncadd [#allocation4], %s246
      %s249 = sshll.u32 [#allocation7], 4
      %s250 = int_to_ptr.vmem [resolvable:$true] %s249
      %252 = dma.vmem_to_hbm [thread:$0]  %s250, 2304, %s2, [#allocation4]
    $region21: #{tpu_custom_call.1} parent=1 // pred_fallthru
      _
    // Predicated region
    $region22: #{tpu_custom_call.1} parent=1 // pred_check
      _
    $region23: #{tpu_custom_call.1} parent=1 // pred_check_branch
      %254 = sbr.rel (0) target = $region25
    $region24: #{tpu_custom_call.1} parent=1 // pred_region
      %255 = dma.done [#allocation4], 2304
    $region25: #{tpu_custom_call.1} parent=1 // pred_fallthru
      _
    %256 = vsyncpa [#allocation3], 1
    %257 = vsyncpa [#allocation6], 1
    %258 = vsyncpa [#allocation4], 1

</llo_original>
